<compile_context>
chip_gen: v5e
topology: v5e:2x2
jax: 0.10.0
libtpu: 0.0.40
codegen_flags: <defaults>
</compile_context>

<pallas_src>
import jax
import jax.numpy as jnp
from jax.experimental import pallas as pl
from jax.experimental.pallas import tpu as pltpu


def _round_up(n, m):
    return ((n + m - 1) // m) * m


def _cdiv(a, b):
    return -(-a // b)


def _silu_f32(x):
    # SiLU = x * sigmoid(x) = x / (1 + exp(-x)).  exp and the approximate
    # reciprocal both issue on the EUP slot, off the VALU critical path.
    return x * pl.reciprocal(1.0 + jnp.exp(-x), approx=True)


# ----------------------------------------------------------------------------
# Pallas kernel: fused 3-layer SiLU MLP velocity field + reverse sign.
# ----------------------------------------------------------------------------
def _velocity_mlp_kernel(ts_ref,                       # SMEM (2,): [t, sign]
                         xh_ref,                       # [TB, D+Hc]  bf16
                         w1_ref, w1t_ref, b1_ref,      # (K,H) bf16, (1,H) f32 x2
                         w2_ref, b2_ref,               # (H,H) bf16, (1,H) f32
                         w3_ref, b3_ref,               # (H,Do) bf16, (1,Do) f32
                         out_ref):                     # [TB, Do]  f32
    t = ts_ref[0]
    sign = ts_ref[1]

    # Loop-invariant (1, H) bias: fold the rank-1 t contribution into b1 once,
    # so only a single broadcast add touches the (TB, H) tile.
    c1 = t * w1t_ref[...] + b1_ref[...]

    # Layer 1: single fused contraction over K = D + Hc (bf16 MXU, f32 acc).
    h1 = jnp.dot(xh_ref[...], w1_ref[...],
                 preferred_element_type=jnp.float32) + c1
    h1 = _silu_f32(h1)

    # Layer 2.
    h2 = jnp.dot(h1.astype(w2_ref.dtype), w2_ref[...],
                 preferred_element_type=jnp.float32) + b2_ref[...]
    h2 = _silu_f32(h2)

    # Output projection, written un-padded (contiguous (TB, D_out) store).
    v = jnp.dot(h2.astype(w3_ref.dtype), w3_ref[...],
                preferred_element_type=jnp.float32) + b3_ref[...]

    out_ref[...] = (sign * v).astype(out_ref.dtype)    # reverse => sign = -1


# ----------------------------------------------------------------------------
# pallas_call wrapper: batch-tiled grid, VMEM-resident weights.
# ----------------------------------------------------------------------------
def _run_velocity_mlp(t, x, h, params, *, reverse):
    w1x, w1h, w1t, b1, w2, b2, w3, b3 = params

    B, D = x.shape
    Hc = h.shape[1]
    H = w1x.shape[1]
    D_out = w3.shape[1]
    K = D + Hc

    # Fused layer-1 operands: one contiguous (B, K) activation stream and one
    # (K, H) weight; matmul operands in bf16 (f32 accumulation in the kernel).
    xh = jnp.concatenate([x, h], axis=1).astype(jnp.bfloat16)
    w1 = jnp.concatenate([w1x, w1h], axis=0).astype(jnp.bfloat16)
    w2b = w2.astype(jnp.bfloat16)
    w3b = w3.astype(jnp.bfloat16)
    w1t_f = w1t.astype(jnp.float32)
    b1_f = b1.astype(jnp.float32)
    b2_f = b2.astype(jnp.float32)
    b3_f = b3.astype(jnp.float32)

    # Batch tile: as large as useful (per-grid-step overhead ~0.35us), chosen
    # from the actual B to minimise zero-padding.  VMEM use stays tiny even at
    # TB_MAX with double-buffering, so no vmem_limit override is needed.
    TB_MAX = 2048
    n_steps = max(1, _cdiv(B, TB_MAX))
    TB = _round_up(_cdiv(B, n_steps), 8)
    Bp = n_steps * TB
    if Bp != B:
        xh = jnp.pad(xh, ((0, Bp - B), (0, 0)))
    # TODO(synk): on v7x, when n_steps == 1 and B is large, splitting into an
    # even number of grid steps would let both TensorCores share the batch.

    sign = -1.0 if reverse else 1.0
    ts = jnp.stack([jnp.asarray(t, jnp.float32).reshape(()),
                    jnp.asarray(sign, jnp.float32)])        # (2,) SMEM scalars

    def resident(arr):  # whole weight/bias in VMEM, same block every grid step
        return pl.BlockSpec(arr.shape, lambda i: (0, 0))

    flops = 2 * Bp * (K * H + H * H + H * D_out)
    transcendentals = 2 * Bp * H
    bytes_accessed = (2 * Bp * K                      # bf16 xh read
                      + 4 * Bp * D_out                # f32 output write
                      + 2 * (K * H + H * H + H * D_out)   # bf16 weights
                      + 4 * (3 * H + D_out))          # f32 w1_t, b1, b2, b3

    out = pl.pallas_call(
        _velocity_mlp_kernel,
        out_shape=jax.ShapeDtypeStruct((Bp, D_out), jnp.float32),
        grid=(n_steps,),
        in_specs=[
            pl.BlockSpec(memory_space=pltpu.MemorySpace.SMEM),   # [t, sign]
            pl.BlockSpec((TB, K), lambda i: (i, 0)),             # fused xh tile
            resident(w1), resident(w1t_f), resident(b1_f),
            resident(w2b), resident(b2_f),
            resident(w3b), resident(b3_f),
        ],
        out_specs=pl.BlockSpec((TB, D_out), lambda i: (i, 0)),
        compiler_params=pltpu.CompilerParams(
            dimension_semantics=("parallel",)),                  # v7x: 2 TCs
        cost_estimate=pl.CostEstimate(
            flops=flops,
            transcendentals=transcendentals,
            bytes_accessed=bytes_accessed),
    )(ts, xh, w1, w1t_f, b1_f, w2b, b2_f, w3b, b3_f)

    return out[:B]


# ----------------------------------------------------------------------------
# ConditionedVelocityModel forward (glue in plain JAX, compute in the kernel).
# ----------------------------------------------------------------------------
def conditioned_velocity_forward(t, x, h=None, *, params, stored_h, reverse):
    """Mirrors ConditionedVelocityModel.forward."""
    # TODO(synk): PyTorch `if not h` also rejects empty tensors; here we only
    # treat h=None as "use the stored conditioning self.h".
    if h is None:
        h = stored_h
    return _run_velocity_mlp(t, x, h, params, reverse=reverse)


# ----------------------------------------------------------------------------
# Deterministic parameter init for the synthetic velocity model (split W1).
# ----------------------------------------------------------------------------
def init_velocity_params(key, d_x, d_h, hidden, d_out):
    k1, k2, k3, k4, k5 = jax.random.split(key, 5)
    s_in = 1.0 / jnp.sqrt(d_x + 1 + d_h)
    s_h = 1.0 / jnp.sqrt(hidden)
    w1x = jax.random.normal(k1, (d_x, hidden), jnp.float32) * s_in
    w1h = jax.random.normal(k2, (d_h, hidden), jnp.float32) * s_in
    w1t = jax.random.normal(k3, (1, hidden), jnp.float32) * s_in
    b1 = jnp.zeros((1, hidden), jnp.float32)
    w2 = jax.random.normal(k4, (hidden, hidden), jnp.float32) * s_h
    b2 = jnp.zeros((1, hidden), jnp.float32)
    w3 = jax.random.normal(k5, (hidden, d_out), jnp.float32) * s_h
    b3 = jnp.zeros((1, d_out), jnp.float32)
    return (w1x, w1h, w1t, b1, w2, b2, w3, b3)


# ----------------------------------------------------------------------------
# Pure-JAX reference (sanity check of the kernel math; f32 everywhere).
# ----------------------------------------------------------------------------
def _ref_forward(t, x, h, params, reverse):
    w1x, w1h, w1t, b1, w2, b2, w3, b3 = params
    t_s = jnp.asarray(t, jnp.float32)
    h1 = jax.nn.silu(x @ w1x + h @ w1h + t_s * w1t + b1)
    h2 = jax.nn.silu(h1 @ w2 + b2)
    v = h2 @ w3 + b3
    return -v if reverse else v


if __name__ == "__main__":
    key = jax.random.PRNGKey(0)
    k_x, k_h, k_p = jax.random.split(key, 3)

    B, D, Hc, HIDDEN = 8, 16, 8, 128          # hidden lane-aligned to 128
    x = jax.random.normal(k_x, (B, D), jnp.float32)
    stored_h = jax.random.normal(k_h, (B, Hc), jnp.float32)   # self.h conditioning
    params = init_velocity_params(k_p, D, Hc, HIDDEN, D)
    t = 0.5

    # reverse=True exercises the sign scalar; h=None exercises the stored-h path.
    out_rev = conditioned_velocity_forward(t, x, h=None, params=params,
                                           stored_h=stored_h, reverse=True)
    out_rev = jax.block_until_ready(out_rev)
    ref_rev = _ref_forward(t, x, stored_h, params, reverse=True)
    assert out_rev.shape == (B, D)
    # bf16 MXU operands with f32 accumulation -> loosened tolerance vs f32 ref.
    assert jnp.allclose(out_rev, ref_rev, atol=5e-2, rtol=5e-2)

    # Non-reversed path with an explicitly supplied h (same compiled kernel).
    out_fwd = conditioned_velocity_forward(t, x, h=stored_h, params=params,
                                           stored_h=None, reverse=False)
    out_fwd = jax.block_until_ready(out_fwd)
    assert jnp.allclose(out_fwd, -out_rev, atol=1e-5, rtol=1e-5)

    print("KERNEL_OK")
</pallas_src>

<mosaic_0001>
module attributes {stable_mosaic.version = 11 : i64} {
  func.func @_velocity_mlp_kernel(%arg0: i32, %arg1: memref<2xf32, #tpu.memory_space<smem>>, %arg2: memref<8x24xbf16, #tpu.memory_space<vmem>>, %arg3: memref<24x128xbf16, #tpu.memory_space<vmem>>, %arg4: memref<1x128xf32, #tpu.memory_space<vmem>>, %arg5: memref<1x128xf32, #tpu.memory_space<vmem>>, %arg6: memref<128x128xbf16, #tpu.memory_space<vmem>>, %arg7: memref<1x128xf32, #tpu.memory_space<vmem>>, %arg8: memref<128x16xbf16, #tpu.memory_space<vmem>>, %arg9: memref<1x16xf32, #tpu.memory_space<vmem>>, %arg10: memref<8x16xf32, #tpu.memory_space<vmem>>) attributes {dimension_semantics = [#tpu.dimension_semantics<parallel>], iteration_bounds = array<i64: 1>, scalar_prefetch = 0 : i64, scratch_operands = 0 : i64, tpu.core_type = #tpu.core_type<tc>, window_params = [{transform_indices = @transform_0, window_bounds = array<i64: 2>}, {transform_indices = @transform_1, window_bounds = array<i64: 8, 24>}, {pipeline_mode = #tpu.pipeline_mode<synchronous>, transform_indices = @transform_2, window_bounds = array<i64: 24, 128>}, {pipeline_mode = #tpu.pipeline_mode<synchronous>, transform_indices = @transform_3, window_bounds = array<i64: 1, 128>}, {pipeline_mode = #tpu.pipeline_mode<synchronous>, transform_indices = @transform_4, window_bounds = array<i64: 1, 128>}, {pipeline_mode = #tpu.pipeline_mode<synchronous>, transform_indices = @transform_5, window_bounds = array<i64: 128, 128>}, {pipeline_mode = #tpu.pipeline_mode<synchronous>, transform_indices = @transform_6, window_bounds = array<i64: 1, 128>}, {pipeline_mode = #tpu.pipeline_mode<synchronous>, transform_indices = @transform_7, window_bounds = array<i64: 128, 16>}, {pipeline_mode = #tpu.pipeline_mode<synchronous>, transform_indices = @transform_8, window_bounds = array<i64: 1, 16>}, {transform_indices = @transform_9, window_bounds = array<i64: 8, 16>}]} {
    %c0 = arith.constant 0 : index
    %0 = memref.load %arg1[%c0] : memref<2xf32, #tpu.memory_space<smem>>
    %c1 = arith.constant 1 : index
    %1 = memref.load %arg1[%c1] : memref<2xf32, #tpu.memory_space<smem>>
    %c0_0 = arith.constant 0 : index
    %c0_1 = arith.constant 0 : index
    %2 = vector.load %arg4[%c0_0, %c0_1] : memref<1x128xf32, #tpu.memory_space<vmem>>, vector<1x128xf32>
    %3 = vector.broadcast %0 : f32 to vector<1x128xf32>
    %4 = arith.mulf %3, %2 : vector<1x128xf32>
    %c0_2 = arith.constant 0 : index
    %c0_3 = arith.constant 0 : index
    %5 = vector.load %arg5[%c0_2, %c0_3] : memref<1x128xf32, #tpu.memory_space<vmem>>, vector<1x128xf32>
    %6 = arith.addf %4, %5 : vector<1x128xf32>
    %c0_4 = arith.constant 0 : index
    %c0_5 = arith.constant 0 : index
    %7 = vector.load %arg2[%c0_4, %c0_5] : memref<8x24xbf16, #tpu.memory_space<vmem>>, vector<8x24xbf16>
    %c0_6 = arith.constant 0 : index
    %c0_7 = arith.constant 0 : index
    %8 = vector.load %arg3[%c0_6, %c0_7] : memref<24x128xbf16, #tpu.memory_space<vmem>>, vector<24x128xbf16>
    %cst = arith.constant dense<0.000000e+00> : vector<8x128xf32>
    %9 = tpu.matmul %7, %8, %cst {dimension_numbers = #tpu.dot_dimension_numbers<[1], [0], [0], [1], [0, 0, 1, 1], [], []>} : vector<8x24xbf16>, vector<24x128xbf16>, vector<8x128xf32> -> vector<8x128xf32>
    %10 = vector.broadcast %6 : vector<1x128xf32> to vector<8x128xf32>
    %11 = arith.addf %9, %10 : vector<8x128xf32>
    %cst_8 = arith.constant 0.000000e+00 : f32
    %12 = vector.broadcast %cst_8 : f32 to vector<8x128xf32>
    %13 = arith.subf %12, %11 : vector<8x128xf32>
    %14 = math.exp %13 : vector<8x128xf32>
    %cst_9 = arith.constant 1.000000e+00 : f32
    %15 = vector.broadcast %cst_9 : f32 to vector<8x128xf32>
    %16 = arith.addf %15, %14 : vector<8x128xf32>
    %17 = tpu.reciprocal %16 {approx = true} : vector<8x128xf32> -> vector<8x128xf32>
    %18 = arith.mulf %11, %17 : vector<8x128xf32>
    %19 = arith.truncf %18 : vector<8x128xf32> to vector<8x128xbf16>
    %c0_10 = arith.constant 0 : index
    %c0_11 = arith.constant 0 : index
    %20 = vector.load %arg6[%c0_10, %c0_11] : memref<128x128xbf16, #tpu.memory_space<vmem>>, vector<128x128xbf16>
    %cst_12 = arith.constant dense<0.000000e+00> : vector<8x128xf32>
    %21 = tpu.matmul %19, %20, %cst_12 {dimension_numbers = #tpu.dot_dimension_numbers<[1], [0], [0], [1], [0, 0, 1, 1], [], []>} : vector<8x128xbf16>, vector<128x128xbf16>, vector<8x128xf32> -> vector<8x128xf32>
    %c0_13 = arith.constant 0 : index
    %c0_14 = arith.constant 0 : index
    %22 = vector.load %arg7[%c0_13, %c0_14] : memref<1x128xf32, #tpu.memory_space<vmem>>, vector<1x128xf32>
    %23 = vector.broadcast %22 : vector<1x128xf32> to vector<8x128xf32>
    %24 = arith.addf %21, %23 : vector<8x128xf32>
    %cst_15 = arith.constant 0.000000e+00 : f32
    %25 = vector.broadcast %cst_15 : f32 to vector<8x128xf32>
    %26 = arith.subf %25, %24 : vector<8x128xf32>
    %27 = math.exp %26 : vector<8x128xf32>
    %cst_16 = arith.constant 1.000000e+00 : f32
    %28 = vector.broadcast %cst_16 : f32 to vector<8x128xf32>
    %29 = arith.addf %28, %27 : vector<8x128xf32>
    %30 = tpu.reciprocal %29 {approx = true} : vector<8x128xf32> -> vector<8x128xf32>
    %31 = arith.mulf %24, %30 : vector<8x128xf32>
    %32 = arith.truncf %31 : vector<8x128xf32> to vector<8x128xbf16>
    %c0_17 = arith.constant 0 : index
    %c0_18 = arith.constant 0 : index
    %33 = vector.load %arg8[%c0_17, %c0_18] : memref<128x16xbf16, #tpu.memory_space<vmem>>, vector<128x16xbf16>
    %cst_19 = arith.constant dense<0.000000e+00> : vector<8x16xf32>
    %34 = tpu.matmul %32, %33, %cst_19 {dimension_numbers = #tpu.dot_dimension_numbers<[1], [0], [0], [1], [0, 0, 1, 1], [], []>} : vector<8x128xbf16>, vector<128x16xbf16>, vector<8x16xf32> -> vector<8x16xf32>
    %c0_20 = arith.constant 0 : index
    %c0_21 = arith.constant 0 : index
    %35 = vector.load %arg9[%c0_20, %c0_21] : memref<1x16xf32, #tpu.memory_space<vmem>>, vector<1x16xf32>
    %36 = vector.broadcast %35 : vector<1x16xf32> to vector<8x16xf32>
    %37 = arith.addf %34, %36 : vector<8x16xf32>
    %38 = vector.broadcast %1 : f32 to vector<8x16xf32>
    %39 = arith.mulf %38, %37 : vector<8x16xf32>
    %c0_22 = arith.constant 0 : index
    %c0_23 = arith.constant 0 : index
    %40 = vector.load %arg10[%c0_22, %c0_23] : memref<8x16xf32, #tpu.memory_space<vmem>>, vector<8x16xf32>
    tpu.vector_store %arg10[%c0_22, %c0_23], %39 {strides = array<i32>} : memref<8x16xf32, #tpu.memory_space<vmem>>, vector<8x16xf32>,
    return
  }
  func.func @transform_0(%arg0: i32) -> i32 {
    %c0_i32 = arith.constant 0 : i32
    %c0_i32_0 = arith.constant 0 : i32
    return %c0_i32 : i32
  }
  func.func @transform_1(%arg0: i32) -> (i32, i32) {
    %c0_i32 = arith.constant 0 : i32
    %c0_i32_0 = arith.constant 0 : i32
    return %arg0, %c0_i32 : i32, i32
  }
  func.func @transform_2(%arg0: i32) -> (i32, i32) {
    %c0_i32 = arith.constant 0 : i32
    %c0_i32_0 = arith.constant 0 : i32
    %c0_i32_1 = arith.constant 0 : i32
    return %c0_i32, %c0_i32_0 : i32, i32
  }
  func.func @transform_3(%arg0: i32) -> (i32, i32) {
    %c0_i32 = arith.constant 0 : i32
    %c0_i32_0 = arith.constant 0 : i32
    %c0_i32_1 = arith.constant 0 : i32
    return %c0_i32, %c0_i32_0 : i32, i32
  }
  func.func @transform_4(%arg0: i32) -> (i32, i32) {
    %c0_i32 = arith.constant 0 : i32
    %c0_i32_0 = arith.constant 0 : i32
    %c0_i32_1 = arith.constant 0 : i32
    return %c0_i32, %c0_i32_0 : i32, i32
  }
  func.func @transform_5(%arg0: i32) -> (i32, i32) {
    %c0_i32 = arith.constant 0 : i32
    %c0_i32_0 = arith.constant 0 : i32
    %c0_i32_1 = arith.constant 0 : i32
    return %c0_i32, %c0_i32_0 : i32, i32
  }
  func.func @transform_6(%arg0: i32) -> (i32, i32) {
    %c0_i32 = arith.constant 0 : i32
    %c0_i32_0 = arith.constant 0 : i32
    %c0_i32_1 = arith.constant 0 : i32
    return %c0_i32, %c0_i32_0 : i32, i32
  }
  func.func @transform_7(%arg0: i32) -> (i32, i32) {
    %c0_i32 = arith.constant 0 : i32
    %c0_i32_0 = arith.constant 0 : i32
    %c0_i32_1 = arith.constant 0 : i32
    return %c0_i32, %c0_i32_0 : i32, i32
  }
  func.func @transform_8(%arg0: i32) -> (i32, i32) {
    %c0_i32 = arith.constant 0 : i32
    %c0_i32_0 = arith.constant 0 : i32
    %c0_i32_1 = arith.constant 0 : i32
    return %c0_i32, %c0_i32_0 : i32, i32
  }
  func.func @transform_9(%arg0: i32) -> (i32, i32) {
    %c0_i32 = arith.constant 0 : i32
    %c0_i32_0 = arith.constant 0 : i32
    return %arg0, %c0_i32 : i32, i32
  }
}

</mosaic_0001>

<llo_original>
// kernel: tpu_custom_call.1
$region0: #{tpu_custom_call.1}
  #allocation0 [shape = 'u32[]', space=smem, size = 0x4, offset = 0x4, fixed_abs, tag = 'smem constant byte address 0x4 - core index']
  #allocation1 [shape = 'u32[72,128]{1,0:T(1,128)}', space=vmem, size = 0x9000, scoped, tag = 'internal scratch']
  %s0 = inlined_call_operand.hbm [shape: f32[2], index: 0, kind: input, shape index: {}]
  %s1 = inlined_call_operand.hbm [shape: bf16[8,24], index: 1, kind: input, shape index: {}]
  %s2 = inlined_call_operand.vmem [shape: bf16[24,128], index: 2, kind: input, shape index: {}]
  %s3 = inlined_call_operand.hbm [shape: f32[1,128], index: 3, kind: input, shape index: {}]
  %s4 = inlined_call_operand.hbm [shape: f32[1,128], index: 4, kind: input, shape index: {}]
  %s5 = inlined_call_operand.vmem [shape: bf16[128,128], index: 5, kind: input, shape index: {}]
  %s6 = inlined_call_operand.vmem [shape: f32[1,128], index: 6, kind: input, shape index: {}]
  %s7 = inlined_call_operand.vmem [shape: bf16[128,16], index: 7, kind: input, shape index: {}]
  %s8 = inlined_call_operand.vmem [shape: f32[1,16], index: 8, kind: input, shape index: {}]
  %s9 = inlined_call_operand.hbm [shape: f32[8,16], index: 9, kind: output, shape index: {}]
  %s10 = sld [smem:[#allocation0]]
  $region62: #{tpu_custom_call.1} parent=0
    _
  %s12 = ssub.s32 1, %s10
  %s13 = scalar_select 0, %s12, %s10
  $region1: #{tpu_custom_call.1} parent=0
    #allocation2 [shape = 'u8[512]{0}', space=smem, size = 0x200, scoped, tag = 'input window, operand 0, single buffered']
    #allocation3 [shape = 's32[1]{0}', space=sflag, size = 0x4, scoped, tag = 'scoped memory for tpu_custom_call.1']
    #allocation4 [shape = 's32[1]{0}', space=sflag, size = 0x4, scoped, tag = 'scoped memory for tpu_custom_call.1']
    #allocation5 [shape = 's32[1]{0}', space=sflag, size = 0x4, scoped, tag = 'scoped memory for tpu_custom_call.1']
    #allocation6 [shape = 'u8[2048]{0}', space=vmem, size = 0x800, scoped, tag = 'input window, operand 1, single buffered']
    #allocation7 [shape = 'u8[512]{0}', space=vmem, size = 0x400, scoped, tag = 'input window, operand 3, single buffered']
    #allocation8 [shape = 's32[1]{0}', space=sflag, size = 0x4, scoped, tag = 'scoped memory for tpu_custom_call.1']
    #allocation9 [shape = 'u8[512]{0}', space=vmem, size = 0x400, scoped, tag = 'input window, operand 4, single buffered']
    #allocation10 [shape = 'u8[4096]{0}', space=vmem, size = 0x1000, scoped, tag = 'output window, operand 0, single buffered']
    %14 = vsyncpa [#allocation5], 0
    %15 = vsyncpa [#allocation3], 0
    %16 = vsyncpa [#allocation8], 0
    %17 = vsyncpa [#allocation4], 0
    // Predicated region
    $region2: #{tpu_custom_call.1} parent=1 // pred_check
      _
    $region3: #{tpu_custom_call.1} parent=1 // pred_check_branch
      %19 = sbr.rel (0) target = $region5
    $region4: #{tpu_custom_call.1} parent=1 // pred_region
      %21 = vsyncadd [#allocation5], 0
      %s23 = sshll.u32 %s0, 4
      %s24 = int_to_ptr.hbm [resolvable:$true] %s23
      %26 = dma.hbm_to_smem %s24, 16, [#allocation2], [#allocation5]
    $region5: #{tpu_custom_call.1} parent=1 // pred_fallthru
      _
    // Predicated region
    $region6: #{tpu_custom_call.1} parent=1 // pred_check
      _
    $region7: #{tpu_custom_call.1} parent=1 // pred_check_branch
      %28 = sbr.rel (0) target = $region9
    $region8: #{tpu_custom_call.1} parent=1 // pred_region
      %30 = vsyncadd [#allocation3], 0
      %s32 = sshll.u32 %s1, 4
      %s33 = int_to_ptr.hbm [resolvable:$true] %s32
      %s34 = sshll.u32 [#allocation6], 4
      %s35 = int_to_ptr.vmem [resolvable:$true] %s34
      %37 = dma.hbm_to_vmem [thread:$0]  %s33, 64, %s35, [#allocation3]
    $region9: #{tpu_custom_call.1} parent=1 // pred_fallthru
      _
    // Predicated region
    $region10: #{tpu_custom_call.1} parent=1 // pred_check
      _
    $region11: #{tpu_custom_call.1} parent=1 // pred_check_branch
      %39 = sbr.rel (0) target = $region13
    $region12: #{tpu_custom_call.1} parent=1 // pred_region
      _
    $region13: #{tpu_custom_call.1} parent=1 // pred_fallthru
      _
    // Predicated region
    $region14: #{tpu_custom_call.1} parent=1 // pred_check
      _
    $region15: #{tpu_custom_call.1} parent=1 // pred_check_branch
      %41 = sbr.rel (0) target = $region17
    $region16: #{tpu_custom_call.1} parent=1 // pred_region
      %43 = vsyncadd [#allocation8], 0
      %s45 = sshll.u32 %s3, 4
      %s46 = int_to_ptr.hbm [resolvable:$true] %s45
      %s47 = sshll.u32 [#allocation7], 4
      %s48 = int_to_ptr.vmem [resolvable:$true] %s47
      %50 = dma.hbm_to_vmem [thread:$0]  %s46, 16, %s48, [#allocation8]
    $region17: #{tpu_custom_call.1} parent=1 // pred_fallthru
      _
    // Predicated region
    $region18: #{tpu_custom_call.1} parent=1 // pred_check
      _
    $region19: #{tpu_custom_call.1} parent=1 // pred_check_branch
      %52 = sbr.rel (0) target = $region21
    $region20: #{tpu_custom_call.1} parent=1 // pred_region
      %54 = vsyncadd [#allocation8], 0
      %s56 = sshll.u32 %s4, 4
      %s57 = int_to_ptr.hbm [resolvable:$true] %s56
      %s58 = sshll.u32 [#allocation9], 4
      %s59 = int_to_ptr.vmem [resolvable:$true] %s58
      %61 = dma.hbm_to_vmem [thread:$0]  %s57, 16, %s59, [#allocation8]
    $region21: #{tpu_custom_call.1} parent=1 // pred_fallthru
      _
    // Predicated region
    $region22: #{tpu_custom_call.1} parent=1 // pred_check
      _
    $region23: #{tpu_custom_call.1} parent=1 // pred_check_branch
      %63 = sbr.rel (0) target = $region25
    $region24: #{tpu_custom_call.1} parent=1 // pred_region
      _
    $region25: #{tpu_custom_call.1} parent=1 // pred_fallthru
      _
    // Predicated region
    $region26: #{tpu_custom_call.1} parent=1 // pred_check
      _
    $region27: #{tpu_custom_call.1} parent=1 // pred_check_branch
      %65 = sbr.rel (0) target = $region29
    $region28: #{tpu_custom_call.1} parent=1 // pred_region
      _
    $region29: #{tpu_custom_call.1} parent=1 // pred_fallthru
      _
    // Predicated region
    $region30: #{tpu_custom_call.1} parent=1 // pred_check
      _
    $region31: #{tpu_custom_call.1} parent=1 // pred_check_branch
      %67 = sbr.rel (0) target = $region33
    $region32: #{tpu_custom_call.1} parent=1 // pred_region
      _
    $region33: #{tpu_custom_call.1} parent=1 // pred_fallthru
      _
    // Predicated region
    $region34: #{tpu_custom_call.1} parent=1 // pred_check
      _
    $region35: #{tpu_custom_call.1} parent=1 // pred_check_branch
      %69 = sbr.rel (0) target = $region37
    $region36: #{tpu_custom_call.1} parent=1 // pred_region
      _
    $region37: #{tpu_custom_call.1} parent=1 // pred_fallthru
      _
    // Predicated region
    $region38: #{tpu_custom_call.1} parent=1 // pred_check
      _
    $region39: #{tpu_custom_call.1} parent=1 // pred_check_branch
      %71 = sbr.rel (0) target = $region41
    $region40: #{tpu_custom_call.1} parent=1 // pred_region
      %73 = dma.done [#allocation5], 16
    $region41: #{tpu_custom_call.1} parent=1 // pred_fallthru
      _
    // Predicated region
    $region42: #{tpu_custom_call.1} parent=1 // pred_check
      _
    $region43: #{tpu_custom_call.1} parent=1 // pred_check_branch
      %75 = sbr.rel (0) target = $region45
    $region44: #{tpu_custom_call.1} parent=1 // pred_region
      %77 = dma.done [#allocation3], 64
    $region45: #{tpu_custom_call.1} parent=1 // pred_fallthru
      _
    // Predicated region
    $region46: #{tpu_custom_call.1} parent=1 // pred_check
      _
    $region47: #{tpu_custom_call.1} parent=1 // pred_check_branch
      %79 = sbr.rel (0) target = $region49
    $region48: #{tpu_custom_call.1} parent=1 // pred_region
      %81 = dma.done [#allocation8], 16
    $region49: #{tpu_custom_call.1} parent=1 // pred_fallthru
      _
    // Predicated region
    $region50: #{tpu_custom_call.1} parent=1 // pred_check
      _
    $region51: #{tpu_custom_call.1} parent=1 // pred_check_branch
      %83 = sbr.rel (0) target = $region53
    $region52: #{tpu_custom_call.1} parent=1 // pred_region
      %85 = dma.done [#allocation8], 16
    $region53: #{tpu_custom_call.1} parent=1 // pred_fallthru
      _
    %86 = sfence
    %s88 = sld [smem:[#allocation2]]
    %s89 = sld [smem:[#allocation2 + $0x1]]
    %v90 = vld [vmem:[#allocation7] sm:$0x1]
    %v91 = vstv %s88
    %v92 = vmul.f32 %v91, %v90
    %v93 = vld [vmem:[#allocation9] sm:$0x1]
    %v94 = vadd.f32 %v92, %v93
    %v95 = vld [vmem:[#allocation6] sm:$0xf]
    %v96 = vld [vmem:[%s2] sm:$0xf]
    %v97 = vld [vmem:[%s2 + $0x4] sm:$0xf]
    %v98 = vld [vmem:[%s2 + $0x8] sm:$0xf]
    %v100 = vperm.slane %v94, 0
    %v105 = vunpack.c.l.b16 %v96
    %v106 = vunpack.c.l.b16 %v97
    %v107 = vunpack.c.l.b16 %v98
    %v108 = vpack.c.b16 %v106, %v105
    %v109 = vpack.c.b16 %v107, %v107
    %vm111 = vcmask 195584
    %v113 = vsel %vm111, %v95, 0
    %vm115 = vcmask 1043456
    %v117 = vsel %vm115, %v109, 0
    %119 = vmatpush.bf16.msra.mxu0 0
    %120 = vmatpush.bf16.msra.mxu0 0
    %121 = vmatpush.bf16.msra.mxu0 0
    %122 = vmatpush.bf16.msra.mxu0 0
    %123 = vmatpush.bf16.msra.mxu0 0
    %124 = vmatpush.bf16.msra.mxu0 0
    %125 = vmatpush.bf16.msra.mxu0 %v117
    %126 = vmatpush.bf16.msra.mxu0 %v108
    %127 = vmatmul.bf16.gmra.mxu0 %v113
    %v128 = vpop.f32.mrf.mxu0
    %v129 = vadd.f32 %v100, %v128
    %v130 = vpop.f32.mrf.mxu0
    %131 = vdwg.mxu0
    %v132 = vsub.f32 0.0, %v129
    %v133 = vmul.f32 %v132, 1.442695
    %v134 = vpow.pop %v133
    %v135 = vadd.f32 %v134, 1.0
    %v136 = vrcp.pop %v135
    %v137 = vmul.f32 %v129, %v136
    %v138 = vpack.c.bf16 %v137, %v137
    %v139 = vld [vmem:[%s5] sm:$0xf]
    %v140 = vld [vmem:[%s5 + $0x4] sm:$0xf]
    %v141 = vld [vmem:[%s5 + $0x8] sm:$0xf]
    %v142 = vld [vmem:[%s5 + $0xc] sm:$0xf]
    %v143 = vld [vmem:[%s5 + $0x10] sm:$0xf]
    %v144 = vld [vmem:[%s5 + $0x14] sm:$0xf]
    %v145 = vld [vmem:[%s5 + $0x18] sm:$0xf]
    %v146 = vld [vmem:[%s5 + $0x1c] sm:$0xf]
    %v147 = vld [vmem:[%s5 + $0x20] sm:$0xf]
    %v148 = vld [vmem:[%s5 + $0x24] sm:$0xf]
    %v149 = vld [vmem:[%s5 + $0x28] sm:$0xf]
    %v150 = vld [vmem:[%s5 + $0x2c] sm:$0xf]
    %v151 = vld [vmem:[%s5 + $0x30] sm:$0xf]
    %v152 = vld [vmem:[%s5 + $0x34] sm:$0xf]
    %v153 = vld [vmem:[%s5 + $0x38] sm:$0xf]
    %v154 = vld [vmem:[%s5 + $0x3c] sm:$0xf]
    %v155 = vld [vmem:[%s6] sm:$0x1]
    %v157 = vperm.slane %v155, 0
    %v175 = vunpack.c.l.b16 %v139
    %v176 = vunpack.c.l.b16 %v140
    %v177 = vunpack.c.l.b16 %v141
    %v178 = vunpack.c.l.b16 %v142
    %v179 = vunpack.c.l.b16 %v143
    %v180 = vunpack.c.l.b16 %v144
    %v181 = vunpack.c.l.b16 %v145
    %v182 = vunpack.c.l.b16 %v146
    %v183 = vunpack.c.l.b16 %v147
    %v184 = vunpack.c.l.b16 %v148
    %v185 = vunpack.c.l.b16 %v149
    %v186 = vunpack.c.l.b16 %v150
    %v187 = vunpack.c.l.b16 %v151
    %v188 = vunpack.c.l.b16 %v152
    %v189 = vunpack.c.l.b16 %v153
    %v190 = vunpack.c.l.b16 %v154
    %v191 = vpack.c.b16 %v176, %v175
    %v192 = vpack.c.b16 %v178, %v177
    %v193 = vpack.c.b16 %v180, %v179
    %v194 = vpack.c.b16 %v182, %v181
    %v195 = vpack.c.b16 %v184, %v183
    %v196 = vpack.c.b16 %v186, %v185
    %v197 = vpack.c.b16 %v188, %v187
    %v198 = vpack.c.b16 %v190, %v189
    %207 = vmatpush.bf16.msra.mxu0 %v198
    %208 = vmatpush.bf16.msra.mxu0 %v197
    %209 = vmatpush.bf16.msra.mxu0 %v196
    %210 = vmatpush.bf16.msra.mxu0 %v195
    %211 = vmatpush.bf16.msra.mxu0 %v194
    %212 = vmatpush.bf16.msra.mxu0 %v193
    %213 = vmatpush.bf16.msra.mxu0 %v192
    %214 = vmatpush.bf16.msra.mxu0 %v191
    %215 = vmatmul.bf16.gmra.mxu0 %v138
    %v216 = vpop.f32.mrf.mxu0
    %v217 = vadd.f32 %v157, %v216
    %v218 = vpop.f32.mrf.mxu0
    %219 = vdwg.mxu0
    %v220 = vsub.f32 0.0, %v217
    %v221 = vmul.f32 %v220, 1.442695
    %v222 = vpow.pop %v221
    %v223 = vadd.f32 %v222, 1.0
    %v224 = vrcp.pop %v223
    %v225 = vmul.f32 %v217, %v224
    %v226 = vpack.c.bf16 %v225, %v225
    %v227 = vld [vmem:[%s7] sm:$0xf]
    %v228 = vld [vmem:[%s7 + $0x4] sm:$0xf]
    %v229 = vld [vmem:[%s7 + $0x8] sm:$0xf]
    %v230 = vld [vmem:[%s7 + $0xc] sm:$0xf]
    %v231 = vld [vmem:[%s7 + $0x10] sm:$0xf]
    %v232 = vld [vmem:[%s7 + $0x14] sm:$0xf]
    %v233 = vld [vmem:[%s7 + $0x18] sm:$0xf]
    %v234 = vld [vmem:[%s7 + $0x1c] sm:$0xf]
    %v235 = vld [vmem:[%s7 + $0x20] sm:$0xf]
    %v236 = vld [vmem:[%s7 + $0x24] sm:$0xf]
    %v237 = vld [vmem:[%s7 + $0x28] sm:$0xf]
    %v238 = vld [vmem:[%s7 + $0x2c] sm:$0xf]
    %v239 = vld [vmem:[%s7 + $0x30] sm:$0xf]
    %v240 = vld [vmem:[%s7 + $0x34] sm:$0xf]
    %v241 = vld [vmem:[%s7 + $0x38] sm:$0xf]
    %v242 = vld [vmem:[%s7 + $0x3c] sm:$0xf]
    %v243 = vld [vmem:[%s8] sm:$0x1]
    %v245 = vperm.slane %v243, 0
    %v263 = vunpack.c.l.b16 %v227
    %v264 = vunpack.c.l.b16 %v228
    %v265 = vunpack.c.l.b16 %v229
    %v266 = vunpack.c.l.b16 %v230
    %v267 = vunpack.c.l.b16 %v231
    %v268 = vunpack.c.l.b16 %v232
    %v269 = vunpack.c.l.b16 %v233
    %v270 = vunpack.c.l.b16 %v234
    %v271 = vunpack.c.l.b16 %v235
    %v272 = vunpack.c.l.b16 %v236
    %v273 = vunpack.c.l.b16 %v237
    %v274 = vunpack.c.l.b16 %v238
    %v275 = vunpack.c.l.b16 %v239
    %v276 = vunpack.c.l.b16 %v240
    %v277 = vunpack.c.l.b16 %v241
    %v278 = vunpack.c.l.b16 %v242
    %v279 = vpack.c.b16 %v264, %v263
    %v280 = vpack.c.b16 %v266, %v265
    %v281 = vpack.c.b16 %v268, %v267
    %v282 = vpack.c.b16 %v270, %v269
    %v283 = vpack.c.b16 %v272, %v271
    %v284 = vpack.c.b16 %v274, %v273
    %v285 = vpack.c.b16 %v276, %v275
    %v286 = vpack.c.b16 %v278, %v277
    %295 = vmatpush.bf16.msra.mxu0 %v286
    %296 = vmatpush.bf16.msra.mxu0 %v285
    %297 = vmatpush.bf16.msra.mxu0 %v284
    %298 = vmatpush.bf16.msra.mxu0 %v283
    %299 = vmatpush.bf16.msra.mxu0 %v282
    %300 = vmatpush.bf16.msra.mxu0 %v281
    %301 = vmatpush.bf16.msra.mxu0 %v280
    %302 = vmatpush.bf16.msra.mxu0 %v279
    %303 = vmatmul.bf16.gmra.mxu0 %v226
    %v304 = vpop.f32.mrf.mxu0
    %v305 = vadd.f32 %v245, %v304
    %v306 = vpop.f32.mrf.mxu0
    %307 = vdwg.mxu0
    %v308 = vstv %s89
    %v309 = vmul.f32 %v308, %v305
    %vm310 = vcmask 130048
    %311 = vst.msk [vmem:[#allocation10] sm:$0xff] %vm310, %v309
    // Predicated region
    $region54: #{tpu_custom_call.1} parent=1 // pred_check
      _
    $region55: #{tpu_custom_call.1} parent=1 // pred_check_branch
      %313 = sbr.rel (0) target = $region57
    $region56: #{tpu_custom_call.1} parent=1 // pred_region
      %315 = vsyncadd [#allocation4], 0
      %s317 = sshll.u32 [#allocation10], 4
      %s318 = int_to_ptr.vmem [resolvable:$true] %s317
      %s319 = sshll.u32 %s9, 4
      %s320 = int_to_ptr.hbm [resolvable:$true] %s319
      %322 = dma.vmem_to_hbm [thread:$0]  %s318, 128, %s320, [#allocation4]
    $region57: #{tpu_custom_call.1} parent=1 // pred_fallthru
      _
    // Predicated region
    $region58: #{tpu_custom_call.1} parent=1 // pred_check
      _
    $region59: #{tpu_custom_call.1} parent=1 // pred_check_branch
      %324 = sbr.rel (0) target = $region61
    $region60: #{tpu_custom_call.1} parent=1 // pred_region
      %326 = dma.done [#allocation4], 128
    $region61: #{tpu_custom_call.1} parent=1 // pred_fallthru
      _
    %327 = vsyncpa [#allocation3], 1
    %328 = vsyncpa [#allocation8], 1
    %329 = vsyncpa [#allocation4], 1
    %330 = vsyncpa [#allocation5], 1

</llo_original>
